<compile_context>
chip_gen: v7x
topology: tpu7x:2x2x1
jax: 0.10.0
libtpu: 0.0.40
codegen_flags: <defaults>
</compile_context>

<pallas_src>
import functools

import jax
import jax.numpy as jnp
import numpy as np
from jax.experimental import pallas as pl
from jax.experimental.pallas import tpu as pltpu


# ---------------------------------------------------------------------------
# Kernels
# ---------------------------------------------------------------------------
def _ln_channels_first_kernel(x_ref, w_ref, b_ref, o_ref, *, eps):
    # x_ref: (1, C, H_tile, W)  -- C (the normalized axis) is fully in-block,
    # so the per-tile mean/var are the exact per-pixel statistics.
    x = x_ref[...].astype(jnp.float32)
    u = jnp.mean(x, axis=1, keepdims=True)            # reduce over C: cheap,
    xc = x - u                                        # not a lane/sublane axis
    s = jnp.mean(xc * xc, axis=1, keepdims=True)
    inv = jax.lax.rsqrt(s + eps)                      # EUP slot, frees VALU
    w = w_ref[...].astype(jnp.float32)                # (1, C, 1, 1)
    b = b_ref[...].astype(jnp.float32)                # (1, C, 1, 1)
    o_ref[...] = (xc * inv * w + b).astype(o_ref.dtype)


def _ln_channels_last_kernel(x_ref, w_ref, b_ref, o_ref, *, eps):
    # x_ref: (M_tile, C) -- normalize over the trailing dim.
    x = x_ref[...].astype(jnp.float32)
    u = jnp.mean(x, axis=-1, keepdims=True)
    xc = x - u
    s = jnp.mean(xc * xc, axis=-1, keepdims=True)
    inv = jax.lax.rsqrt(s + eps)
    w = w_ref[...].astype(jnp.float32)                # (1, C)
    b = b_ref[...].astype(jnp.float32)                # (1, C)
    o_ref[...] = (xc * inv * w + b).astype(o_ref.dtype)


# ---------------------------------------------------------------------------
# Tile-size helpers (keep blocks comfortably inside default scoped VMEM on
# v5e / v6e / v7x; second-to-last block dim must be a multiple of 8 or full).
# ---------------------------------------------------------------------------
_VMEM_BUDGET_BYTES = 4 * 1024 * 1024  # per pipelined in+out pair (x4 buffers)


def _largest_divisor_tile(total, unit, cap):
    """Largest divisor of `total` that is a multiple of `unit` and <= cap."""
    best = None
    for t in range(unit, min(total, cap) + 1, unit):
        if total % t == 0:
            best = t
    return best


def _pick_h_tile(C, H, W, itemsize):
    bytes_per_row = C * W * max(itemsize, 4) * 4      # x + out, double-buffered
    cap = max(8, _VMEM_BUDGET_BYTES // max(bytes_per_row, 1))
    if H <= cap:
        return H
    t = _largest_divisor_tile(H, 8, cap)
    return t if t is not None else H


def _pick_m_tile(M, C, itemsize):
    bytes_per_row = C * max(itemsize, 4) * 4
    cap = max(8, _VMEM_BUDGET_BYTES // max(bytes_per_row, 1))
    if M <= cap:
        return M
    t = _largest_divisor_tile(M, 8, cap)
    return t if t is not None else M


# ---------------------------------------------------------------------------
# Module equivalent
# ---------------------------------------------------------------------------
class LayerNormPallas:
    def __init__(self, normalized_shape, eps=1e-6, data_format="channels_first"):
        if data_format not in ("channels_last", "channels_first"):
            raise NotImplementedError
        self.weight = jnp.ones((normalized_shape,), jnp.float32)
        self.bias = jnp.zeros((normalized_shape,), jnp.float32)
        self.eps = float(eps)
        self.data_format = data_format
        self.normalized_shape = (normalized_shape,)

    def __call__(self, x):
        if self.data_format == "channels_last":
            return self._forward_channels_last(x)
        return self._forward_channels_first(x)

    # ----- channels_first: NCHW, normalize over dim=1 ----------------------
    def _forward_channels_first(self, x):
        assert x.ndim == 4, "channels_first path expects NCHW input"
        B, C, H, W = x.shape
        assert C == self.normalized_shape[0]

        h_tile = _pick_h_tile(C, H, W, x.dtype.itemsize)
        grid = (B, H // h_tile)
        kernel = functools.partial(_ln_channels_first_kernel, eps=self.eps)

        w4 = self.weight.reshape(1, C, 1, 1)
        b4 = self.bias.reshape(1, C, 1, 1)

        return pl.pallas_call(
            kernel,
            out_shape=jax.ShapeDtypeStruct(x.shape, x.dtype),
            grid=grid,
            in_specs=[
                pl.BlockSpec((1, C, h_tile, W), lambda b, h: (b, 0, h, 0)),
                pl.BlockSpec((1, C, 1, 1), lambda b, h: (0, 0, 0, 0)),
                pl.BlockSpec((1, C, 1, 1), lambda b, h: (0, 0, 0, 0)),
            ],
            out_specs=pl.BlockSpec((1, C, h_tile, W), lambda b, h: (b, 0, h, 0)),
            compiler_params=pltpu.CompilerParams(
                dimension_semantics=("parallel", "parallel")),
        )(x, w4, b4)

    # ----- channels_last: normalize over the trailing dim ------------------
    def _forward_channels_last(self, x):
        C = self.normalized_shape[0]
        assert x.shape[-1] == C
        orig_shape = x.shape
        M = int(np.prod(orig_shape[:-1]))
        x2 = x.reshape(M, C)

        m_tile = _pick_m_tile(M, C, x.dtype.itemsize)
        grid = (M // m_tile,)
        kernel = functools.partial(_ln_channels_last_kernel, eps=self.eps)

        out = pl.pallas_call(
            kernel,
            out_shape=jax.ShapeDtypeStruct((M, C), x.dtype),
            grid=grid,
            in_specs=[
                pl.BlockSpec((m_tile, C), lambda i: (i, 0)),
                pl.BlockSpec((1, C), lambda i: (0, 0)),
                pl.BlockSpec((1, C), lambda i: (0, 0)),
            ],
            out_specs=pl.BlockSpec((m_tile, C), lambda i: (i, 0)),
            compiler_params=pltpu.CompilerParams(
                dimension_semantics=("parallel",)),
        )(x2, self.weight.reshape(1, C), self.bias.reshape(1, C))
        return out.reshape(orig_shape)


# ---------------------------------------------------------------------------
# Pure-JAX references (for sanity checking only)
# ---------------------------------------------------------------------------
def _ref_channels_first(x, w, b, eps):
    x = x.astype(jnp.float32)
    u = jnp.mean(x, axis=1, keepdims=True)
    s = jnp.mean((x - u) ** 2, axis=1, keepdims=True)
    y = (x - u) / jnp.sqrt(s + eps)
    return w[None, :, None, None] * y + b[None, :, None, None]


def _ref_channels_last(x, w, b, eps):
    x = x.astype(jnp.float32)
    u = jnp.mean(x, axis=-1, keepdims=True)
    s = jnp.mean((x - u) ** 2, axis=-1, keepdims=True)
    y = (x - u) / jnp.sqrt(s + eps)
    return y * w + b


# ---------------------------------------------------------------------------
if __name__ == "__main__":
    key = jax.random.PRNGKey(0)
    kx, kw, kb, ky = jax.random.split(key, 4)

    B, C, H, W = 2, 4, 16, 16
    x = jax.random.normal(kx, (B, C, H, W), dtype=jnp.float32)

    # channels_first (default path of the module)
    ln = LayerNormPallas(C, eps=1e-6, data_format="channels_first")
    ln.weight = jax.random.normal(kw, (C,), dtype=jnp.float32)
    ln.bias = jax.random.normal(kb, (C,), dtype=jnp.float32)

    out = ln(x)
    jax.block_until_ready(out)
    ref = _ref_channels_first(x, ln.weight, ln.bias, ln.eps)
    assert jnp.allclose(out, ref, atol=1e-5, rtol=1e-5), float(
        jnp.max(jnp.abs(out - ref)))

    # channels_last path
    ln_cl = LayerNormPallas(C, eps=1e-6, data_format="channels_last")
    ln_cl.weight = ln.weight
    ln_cl.bias = ln.bias
    x_cl = jax.random.normal(ky, (B, H, W, C), dtype=jnp.float32)
    out_cl = ln_cl(x_cl)
    jax.block_until_ready(out_cl)
    ref_cl = _ref_channels_last(x_cl, ln_cl.weight, ln_cl.bias, ln_cl.eps)
    assert jnp.allclose(out_cl, ref_cl, atol=1e-5, rtol=1e-5), float(
        jnp.max(jnp.abs(out_cl - ref_cl)))

    print("KERNEL_OK")
</pallas_src>

<mosaic_0001>
module attributes {stable_mosaic.version = 11 : i64} {
  func.func @_ln_channels_first_kernel(%arg0: i32, %arg1: i32, %arg2: memref<1x4x16x16xf32, #tpu.memory_space<vmem>>, %arg3: memref<1x4x1x1xf32, #tpu.memory_space<vmem>>, %arg4: memref<1x4x1x1xf32, #tpu.memory_space<vmem>>, %arg5: memref<1x4x16x16xf32, #tpu.memory_space<vmem>>) attributes {dimension_semantics = [#tpu.dimension_semantics<parallel>, #tpu.dimension_semantics<parallel>], iteration_bounds = array<i64: 2, 1>, scalar_prefetch = 0 : i64, scratch_operands = 0 : i64, tpu.core_type = #tpu.core_type<tc>, window_params = [{transform_indices = @transform_0, window_bounds = array<i64: 1, 4, 16, 16>}, {pipeline_mode = #tpu.pipeline_mode<synchronous>, transform_indices = @transform_1, window_bounds = array<i64: 1, 4, 1, 1>}, {pipeline_mode = #tpu.pipeline_mode<synchronous>, transform_indices = @transform_2, window_bounds = array<i64: 1, 4, 1, 1>}, {transform_indices = @transform_3, window_bounds = array<i64: 1, 4, 16, 16>}]} {
    %c0 = arith.constant 0 : index
    %c0_0 = arith.constant 0 : index
    %c0_1 = arith.constant 0 : index
    %c0_2 = arith.constant 0 : index
    %0 = vector.load %arg2[%c0, %c0_0, %c0_1, %c0_2] : memref<1x4x16x16xf32, #tpu.memory_space<vmem>>, vector<1x4x16x16xf32>
    %cst = arith.constant dense<0.000000e+00> : vector<1x16x16xf32>
    %1 = vector.multi_reduction <add>, %0, %cst [1] : vector<1x4x16x16xf32> to vector<1x16x16xf32>
    %2 = vector.shape_cast %1 : vector<1x16x16xf32> to vector<1x1x16x16xf32>
    %cst_3 = arith.constant 4.000000e+00 : f32
    %3 = vector.broadcast %cst_3 : f32 to vector<1x1x16x16xf32>
    %4 = arith.divf %2, %3 : vector<1x1x16x16xf32>
    %5 = vector.broadcast %4 : vector<1x1x16x16xf32> to vector<1x4x16x16xf32>
    %6 = arith.subf %0, %5 : vector<1x4x16x16xf32>
    %7 = arith.mulf %6, %6 : vector<1x4x16x16xf32>
    %cst_4 = arith.constant dense<0.000000e+00> : vector<1x16x16xf32>
    %8 = vector.multi_reduction <add>, %7, %cst_4 [1] : vector<1x4x16x16xf32> to vector<1x16x16xf32>
    %9 = vector.shape_cast %8 : vector<1x16x16xf32> to vector<1x1x16x16xf32>
    %cst_5 = arith.constant 4.000000e+00 : f32
    %10 = vector.broadcast %cst_5 : f32 to vector<1x1x16x16xf32>
    %11 = arith.divf %9, %10 : vector<1x1x16x16xf32>
    %cst_6 = arith.constant 9.99999997E-7 : f32
    %12 = vector.broadcast %cst_6 : f32 to vector<1x1x16x16xf32>
    %13 = arith.addf %11, %12 : vector<1x1x16x16xf32>
    %14 = math.rsqrt %13 : vector<1x1x16x16xf32>
    %c0_7 = arith.constant 0 : index
    %c0_8 = arith.constant 0 : index
    %c0_9 = arith.constant 0 : index
    %c0_10 = arith.constant 0 : index
    %15 = vector.load %arg3[%c0_7, %c0_8, %c0_9, %c0_10] : memref<1x4x1x1xf32, #tpu.memory_space<vmem>>, vector<1x4x1x1xf32>
    %c0_11 = arith.constant 0 : index
    %c0_12 = arith.constant 0 : index
    %c0_13 = arith.constant 0 : index
    %c0_14 = arith.constant 0 : index
    %16 = vector.load %arg4[%c0_11, %c0_12, %c0_13, %c0_14] : memref<1x4x1x1xf32, #tpu.memory_space<vmem>>, vector<1x4x1x1xf32>
    %17 = vector.broadcast %14 : vector<1x1x16x16xf32> to vector<1x4x16x16xf32>
    %18 = arith.mulf %6, %17 : vector<1x4x16x16xf32>
    %19 = vector.broadcast %15 : vector<1x4x1x1xf32> to vector<1x4x16x16xf32>
    %20 = arith.mulf %18, %19 : vector<1x4x16x16xf32>
    %21 = vector.broadcast %16 : vector<1x4x1x1xf32> to vector<1x4x16x16xf32>
    %22 = arith.addf %20, %21 : vector<1x4x16x16xf32>
    %c0_15 = arith.constant 0 : index
    %c0_16 = arith.constant 0 : index
    %c0_17 = arith.constant 0 : index
    %c0_18 = arith.constant 0 : index
    %23 = vector.load %arg5[%c0_15, %c0_16, %c0_17, %c0_18] : memref<1x4x16x16xf32, #tpu.memory_space<vmem>>, vector<1x4x16x16xf32>
    tpu.vector_store %arg5[%c0_15, %c0_16, %c0_17, %c0_18], %22 {strides = array<i32>} : memref<1x4x16x16xf32, #tpu.memory_space<vmem>>, vector<1x4x16x16xf32>,
    return
  }
  func.func @transform_0(%arg0: i32, %arg1: i32) -> (i32, i32, i32, i32) {
    %c0_i32 = arith.constant 0 : i32
    %c0_i32_0 = arith.constant 0 : i32
    %c0_i32_1 = arith.constant 0 : i32
    return %arg0, %c0_i32, %arg1, %c0_i32_0 : i32, i32, i32, i32
  }
  func.func @transform_1(%arg0: i32, %arg1: i32) -> (i32, i32, i32, i32) {
    %c0_i32 = arith.constant 0 : i32
    %c0_i32_0 = arith.constant 0 : i32
    %c0_i32_1 = arith.constant 0 : i32
    %c0_i32_2 = arith.constant 0 : i32
    %c0_i32_3 = arith.constant 0 : i32
    return %c0_i32, %c0_i32_0, %c0_i32_1, %c0_i32_2 : i32, i32, i32, i32
  }
  func.func @transform_2(%arg0: i32, %arg1: i32) -> (i32, i32, i32, i32) {
    %c0_i32 = arith.constant 0 : i32
    %c0_i32_0 = arith.constant 0 : i32
    %c0_i32_1 = arith.constant 0 : i32
    %c0_i32_2 = arith.constant 0 : i32
    %c0_i32_3 = arith.constant 0 : i32
    return %c0_i32, %c0_i32_0, %c0_i32_1, %c0_i32_2 : i32, i32, i32, i32
  }
  func.func @transform_3(%arg0: i32, %arg1: i32) -> (i32, i32, i32, i32) {
    %c0_i32 = arith.constant 0 : i32
    %c0_i32_0 = arith.constant 0 : i32
    %c0_i32_1 = arith.constant 0 : i32
    return %arg0, %c0_i32, %arg1, %c0_i32_0 : i32, i32, i32, i32
  }
}

</mosaic_0001>

<llo_original>
// kernel: tpu_custom_call.1
$region0: #{tpu_custom_call.1}
  #allocation0 [shape = 'u32[]', space=smem, size = 0x4, offset = 0x4, fixed_abs, tag = 'smem constant byte address 0x4 - core index']
  #allocation1 [shape = 'u32[144,128]{1,0:T(1,128)}', space=vmem, size = 0x12000, scoped, tag = 'internal scratch']
  %s0 = inlined_call_operand.hbm [shape: f32[2,4,16,16], index: 0, kind: input, shape index: {}]
  %s1 = inlined_call_operand.vmem [shape: f32[1,4,1,1], index: 1, kind: input, shape index: {}]
  %s2 = inlined_call_operand.vmem [shape: f32[1,4,1,1], index: 2, kind: input, shape index: {}]
  %s3 = inlined_call_operand.hbm [shape: f32[2,4,16,16], index: 3, kind: output, shape index: {}]
  %s4 = sld [smem:[#allocation0]]
  $region49: #{tpu_custom_call.1} parent=0
    _
  %s6 = ssub.s32 1, %s4
  %s7 = scalar_select 0, %s6, %s4
  $region1: #{tpu_custom_call.1} parent=0
    #allocation2 [shape = 'u8[65536]{0}', space=vmem, size = 0x10000, scoped, tag = 'input window, operand 0']
    #allocation3 [shape = 's32[2]{0}', space=sflag, size = 0x8, scoped, tag = 'scoped memory for tpu_custom_call.1']
    #allocation4 [shape = 's32[2]{0}', space=sflag, size = 0x8, scoped, tag = 'scoped memory for tpu_custom_call.1']
    #allocation5 [shape = 'u8[65536]{0}', space=vmem, size = 0x10000, scoped, tag = 'output window, operand 0']
    %8 = vsyncpa [#allocation3], 0
    %s9 = scalar_lea.sflag [#allocation3], 1
    %10 = vsyncpa %s9, 0
    %11 = vsyncpa [#allocation4], 0
    %s12 = scalar_lea.sflag [#allocation4], 1
    %13 = vsyncpa %s12, 0
    loop: start=0, step=1, limit=4
    $region2: #{tpu_custom_call.1} parent=1 // loop_pre_header
      _
    $region3: #{tpu_custom_call.1} parent=1 // loop_header
      %s15 = sphi 0, %s19
      %p16 = scmp.ge.s32.totalorder %s15, 4
      %s22 = sphi 0, %s34
      %s23 = sphi 0, %s30
      %s24 = sphi 0, %s22
      %s25 = sphi 0, %s23
      %s26 = sphi 0, %s24
      %s27 = sphi 0, %s25
      %s39 = sphi 0, %s41
      %s42 = sphi 0, %s39
      %s43 = sphi 0, %s42
      %s59 = sphi 0, %s43
      %s63 = sphi 0, %s63
      %s65 = sphi 0, %s63
      %s66 = sphi 0, %s65
      %s80 = sphi 0, %s66
      %s84 = sphi 0, %s84
      %s86 = sphi 0, %s84
      %s87 = sphi 0, %s86
      %s101 = sphi 0, %s87
      %s109 = sphi 0, %s111
      %s112 = sphi 0, %s109
      %s113 = sphi 0, %s112
      %s129 = sphi 0, %s113
    $region4: #{tpu_custom_call.1} parent=1 // loop_header_branch
      %18 = sbr.rel (%p16) target = $region8
    $region5: #{tpu_custom_call.1} parent=1 // loop_body
      %s20 = ssub.s32 %s15, 1
      %s21 = ssub.s32 %s15, 2
      %s28 = sadd.s32 1, %s23
      %p29 = scmp.ge.s32.totalorder %s28, 1
      %s30 = scalar_select %p29, 0, %s28
      %s31 = sadd.s32 1, %s22
      %s32 = scalar_select %p29, %s31, %s22
      %p33 = scmp.ge.s32.totalorder %s32, 2
      %s34 = scalar_select %p33, 0, %s32
      %s35 = ssub.s32 %s22, %s34
      %s36 = ssub.s32 %s23, %s30
      %s37 = sor.u32 %s35, %s36
      %p38 = scmp.eq.s32.totalorder %s37, 0
      %s40 = sadd.s32 %s39, 1
      %s41 = scalar_select %p38, %s39, %s40
      %p44 = pneg %p38
      %p45 = scmp.eq.s32.totalorder %s15, 1
      %p46 = por %p44, %p45
      %p47 = scmp.ne.s32.totalorder %s39, %s42
      %p48 = scmp.eq.s32.totalorder %s15, 0
      %p49 = por %p47, %p48
      %p50 = scmp.ne.s32.totalorder %s39, %s42
      %p51 = scmp.eq.s32.totalorder %s20, 1
      %p52 = por %p50, %p51
      %p53 = scmp.ne.s32.totalorder %s42, %s43
      %p54 = scmp.eq.s32.totalorder %s20, 0
      %p55 = por %p53, %p54
      %p56 = scmp.ne.s32.totalorder %s42, %s43
      %p57 = scmp.eq.s32.totalorder %s21, 1
      %p58 = por %p56, %p57
      %p60 = scmp.ne.s32.totalorder %s43, %s59
      %p61 = scmp.eq.s32.totalorder %s21, 0
      %p62 = por %p60, %p61
      %s64 = sadd.s32 %s63, 1
      %p67 = scmp.eq.s32.totalorder %s15, 1
      %p68 = scmp.ne.s32.totalorder %s63, %s65
      %p69 = scmp.eq.s32.totalorder %s15, 0
      %p70 = por %p68, %p69
      %p71 = scmp.ne.s32.totalorder %s63, %s65
      %p72 = scmp.eq.s32.totalorder %s20, 1
      %p73 = por %p71, %p72
      %p74 = scmp.ne.s32.totalorder %s65, %s66
      %p75 = scmp.eq.s32.totalorder %s20, 0
      %p76 = por %p74, %p75
      %p77 = scmp.ne.s32.totalorder %s65, %s66
      %p78 = scmp.eq.s32.totalorder %s21, 1
      %p79 = por %p77, %p78
      %p81 = scmp.ne.s32.totalorder %s66, %s80
      %p82 = scmp.eq.s32.totalorder %s21, 0
      %p83 = por %p81, %p82
      %s85 = sadd.s32 %s84, 1
      %p88 = scmp.eq.s32.totalorder %s15, 1
      %p89 = scmp.ne.s32.totalorder %s84, %s86
      %p90 = scmp.eq.s32.totalorder %s15, 0
      %p91 = por %p89, %p90
      %p92 = scmp.ne.s32.totalorder %s84, %s86
      %p93 = scmp.eq.s32.totalorder %s20, 1
      %p94 = por %p92, %p93
      %p95 = scmp.ne.s32.totalorder %s86, %s87
      %p96 = scmp.eq.s32.totalorder %s20, 0
      %p97 = por %p95, %p96
      %p98 = scmp.ne.s32.totalorder %s86, %s87
      %p99 = scmp.eq.s32.totalorder %s21, 1
      %p100 = por %p98, %p99
      %p102 = scmp.ne.s32.totalorder %s87, %s101
      %p103 = scmp.eq.s32.totalorder %s21, 0
      %p104 = por %p102, %p103
      %s105 = ssub.s32 %s22, %s34
      %s106 = ssub.s32 %s23, %s30
      %s107 = sor.u32 %s105, %s106
      %p108 = scmp.eq.s32.totalorder %s107, 0
      %s110 = sadd.s32 %s109, 1
      %s111 = scalar_select %p108, %s109, %s110
      %p114 = pneg %p108
      %p115 = scmp.eq.s32.totalorder %s15, 1
      %p116 = por %p114, %p115
      %p117 = scmp.ne.s32.totalorder %s109, %s112
      %p118 = scmp.eq.s32.totalorder %s15, 0
      %p119 = por %p117, %p118
      %p120 = scmp.ne.s32.totalorder %s109, %s112
      %p121 = scmp.eq.s32.totalorder %s20, 1
      %p122 = por %p120, %p121
      %p123 = scmp.ne.s32.totalorder %s112, %s113
      %p124 = scmp.eq.s32.totalorder %s20, 0
      %p125 = por %p123, %p124
      %p126 = scmp.ne.s32.totalorder %s112, %s113
      %p127 = scmp.eq.s32.totalorder %s21, 1
      %p128 = por %p126, %p127
      %p130 = scmp.ne.s32.totalorder %s113, %s129
      %p131 = scmp.eq.s32.totalorder %s21, 0
      %p132 = por %p130, %p131
      %p133 = scmp.le.s32.totalorder 1, %s15
      %p134 = scmp.lt.s32.totalorder %s15, 3
      %p135 = pnand %p133, %p134
      %p136 = pneg %p135
      // Predicated region
      $region9: #{tpu_custom_call.1} parent=5 // pred_check
        _
      $region10: #{tpu_custom_call.1} parent=5 // pred_check_branch
        %138 = sbr.rel (%p135) target = $region12
      $region11: #{tpu_custom_call.1} parent=5 // pred_region
        %s139 = ssub.s32 %s15, 1
        // Predicated region
        $region13: #{tpu_custom_call.1} parent=11 // pred_check
          %p140 = pneg %p76
        $region14: #{tpu_custom_call.1} parent=11 // pred_check_branch
          %142 = sbr.rel (%p140) target = $region16
        $region15: #{tpu_custom_call.1} parent=11 // pred_region
          _
        $region16: #{tpu_custom_call.1} parent=11 // pred_fallthru
          _
        // Predicated region
        $region17: #{tpu_custom_call.1} parent=11 // pred_check
          %p143 = pneg %p97
        $region18: #{tpu_custom_call.1} parent=11 // pred_check_branch
          %145 = sbr.rel (%p143) target = $region20
        $region19: #{tpu_custom_call.1} parent=11 // pred_region
          _
        $region20: #{tpu_custom_call.1} parent=11 // pred_fallthru
          _
      $region12: #{tpu_custom_call.1} parent=5 // pred_fallthru
        _
      %p146 = scmp.lt.s32.totalorder %s15, 2
      // Predicated region
      $region21: #{tpu_custom_call.1} parent=5 // pred_check
        %p147 = pneg %p146
      $region22: #{tpu_custom_call.1} parent=5 // pred_check_branch
        %149 = sbr.rel (%p147) target = $region24
      $region23: #{tpu_custom_call.1} parent=5 // pred_region
        // Predicated region
        $region25: #{tpu_custom_call.1} parent=23 // pred_check
          %p150 = pneg %p49
        $region26: #{tpu_custom_call.1} parent=23 // pred_check_branch
          %152 = sbr.rel (%p150) target = $region28
        $region27: #{tpu_custom_call.1} parent=23 // pred_region
          %s153 = sand.u32 %s39, 1
          %s154 = scalar_lea.sflag [#allocation3], %s153
          %s155 = sand.u32 %s39, 1
          %s156 = smul.addr %s155, 64
          %s157 = scalar_lea.vmem [#allocation2], %s156
          %s158 = smul.u32 2, %s23
          %s160 = ssub.s32 1024, 1024
          %161 = vsyncadd %s154, %s160
          %s162 = smul.addr %s22, 8
          %s163 = sadd.s32 %s158, %s162
          %s164 = smul.addr %s163, 128
          %s165 = scalar_lea.hbm %s0, %s164
          %s166 = sshll.u32 %s157, 4
          %s167 = int_to_ptr.vmem [resolvable:$true] %s166
          %172 = dma.hbm_to_vmem [thread:$0]  %s165, 1024, %s167, %s154, 128, 128, 8
        $region28: #{tpu_custom_call.1} parent=23 // pred_fallthru
          _
      $region24: #{tpu_custom_call.1} parent=5 // pred_fallthru
        _
      %p173 = scmp.le.s32.totalorder 1, %s15
      %p174 = scmp.lt.s32.totalorder %s15, 3
      %p175 = pnand %p173, %p174
      %p176 = pneg %p175
      // Predicated region
      $region29: #{tpu_custom_call.1} parent=5 // pred_check
        _
      $region30: #{tpu_custom_call.1} parent=5 // pred_check_branch
        %178 = sbr.rel (%p175) target = $region32
      $region31: #{tpu_custom_call.1} parent=5 // pred_region
        %s179 = ssub.s32 %s15, 1
        %s180 = sand.u32 %s42, 1
        %s181 = scalar_lea.sflag [#allocation3], %s180
        %s182 = sand.u32 %s42, 1
        %s183 = smul.addr %s182, 64
        %s184 = scalar_lea.vmem [#allocation2], %s183
        // Predicated region
        $region33: #{tpu_custom_call.1} parent=31 // pred_check
          %p185 = pneg %p55
        $region34: #{tpu_custom_call.1} parent=31 // pred_check_branch
          %187 = sbr.rel (%p185) target = $region36
        $region35: #{tpu_custom_call.1} parent=31 // pred_region
          %188 = dma.done %s181, 1024
        $region36: #{tpu_custom_call.1} parent=31 // pred_fallthru
          _
        %s189 = sand.u32 %s42, 1
        %s190 = scalar_lea.sflag [#allocation3], %s189
        %s191 = sand.u32 %s42, 1
        %s192 = smul.addr %s191, 64
        %s193 = scalar_lea.vmem [#allocation2], %s192
        %p194 = pneg %p55
        %p195 = pneg %p52
        %p196 = pneg %p76
        %p197 = pneg %p73
        %p198 = pneg %p97
        %p199 = pneg %p94
        %p200 = pneg %p125
        %p201 = pneg %p122
        %s202 = sand.u32 %s112, 1
        %s203 = scalar_lea.sflag [#allocation4], %s202
        %s204 = sand.u32 %s112, 1
        %s205 = smul.addr %s204, 64
        %s206 = scalar_lea.vmem [#allocation5], %s205
        %s207 = smul.u32 2, %s25
        %s208 = smul.u32 2, %s25
        %v209 = vld [vmem:[%s184] sm:$0xff]
        %v210 = vld [vmem:[%s184 + $0x8] sm:$0xff]
        %v211 = vld [vmem:[%s184 + $0x10] sm:$0xff]
        %v212 = vld [vmem:[%s184 + $0x18] sm:$0xff]
        %v213 = vld [vmem:[%s184 + $0x20] sm:$0xff]
        %v214 = vld [vmem:[%s184 + $0x28] sm:$0xff]
        %v215 = vld [vmem:[%s184 + $0x30] sm:$0xff]
        %v216 = vld [vmem:[%s184 + $0x38] sm:$0xff]
        %vm217 = vcmask 130048
        %v218 = vsel %vm217, %v209, 0.0
        %v219 = vsel %vm217, %v211, 0.0
        %v220 = vadd.f32 %v218, %v219
        %v221 = vsel %vm217, %v213, 0.0
        %v222 = vadd.f32 %v220, %v221
        %v223 = vsel %vm217, %v215, 0.0
        %v224 = vadd.f32 %v222, %v223
        %v225 = vsel %vm217, %v210, 0.0
        %v226 = vsel %vm217, %v212, 0.0
        %v227 = vadd.f32 %v225, %v226
        %v228 = vsel %vm217, %v214, 0.0
        %v229 = vadd.f32 %v227, %v228
        %v230 = vsel %vm217, %v216, 0.0
        %v231 = vadd.f32 %v229, %v230
        %v232 = vrcp.pop 4.0
        %v233 = vmul.f32 %v224, %v232
        %v234 = vmul.f32 %v231, %v232
        %v235 = vsub.f32 %v209, %v233
        %v236 = vsub.f32 %v210, %v234
        %v237 = vsub.f32 %v211, %v233
        %v238 = vsub.f32 %v212, %v234
        %v239 = vsub.f32 %v213, %v233
        %v240 = vsub.f32 %v214, %v234
        %v241 = vsub.f32 %v215, %v233
        %v242 = vsub.f32 %v216, %v234
        %v243 = vmul.f32 %v235, %v235
        %v244 = vmul.f32 %v236, %v236
        %v245 = vmul.f32 %v237, %v237
        %v246 = vmul.f32 %v238, %v238
        %v247 = vmul.f32 %v239, %v239
        %v248 = vmul.f32 %v240, %v240
        %v249 = vmul.f32 %v241, %v241
        %v250 = vmul.f32 %v242, %v242
        %v251 = vsel %vm217, %v243, 0.0
        %v252 = vsel %vm217, %v245, 0.0
        %v253 = vadd.f32 %v251, %v252
        %v254 = vsel %vm217, %v247, 0.0
        %v255 = vadd.f32 %v253, %v254
        %v256 = vsel %vm217, %v249, 0.0
        %v257 = vadd.f32 %v255, %v256
        %v258 = vsel %vm217, %v244, 0.0
        %v259 = vsel %vm217, %v246, 0.0
        %v260 = vadd.f32 %v258, %v259
        %v261 = vsel %vm217, %v248, 0.0
        %v262 = vadd.f32 %v260, %v261
        %v263 = vsel %vm217, %v250, 0.0
        %v264 = vadd.f32 %v262, %v263
        %v265 = vmul.f32 %v257, %v232
        %v266 = vmul.f32 %v264, %v232
        %v267 = vadd.f32 %v265, 1e-06
        %v268 = vadd.f32 %v266, 1e-06
        %v269 = vrsqrt.pop %v267
        %v270 = vrsqrt.pop %v268
        %v271 = vld [vmem:[%s1] sm:$0x1]
        %v272 = vld [vmem:[%s1 + $0x1] sm:$0x1]
        %v273 = vld [vmem:[%s1 + $0x2] sm:$0x1]
        %v274 = vld [vmem:[%s1 + $0x3] sm:$0x1]
        %v275 = vld [vmem:[%s2] sm:$0x1]
        %v276 = vld [vmem:[%s2 + $0x1] sm:$0x1]
        %v277 = vld [vmem:[%s2 + $0x2] sm:$0x1]
        %v278 = vld [vmem:[%s2 + $0x3] sm:$0x1]
        %v279 = vmul.f32 %v235, %v269
        %v280 = vmul.f32 %v236, %v270
        %v281 = vmul.f32 %v237, %v269
        %v282 = vmul.f32 %v238, %v270
        %v283 = vmul.f32 %v239, %v269
        %v284 = vmul.f32 %v240, %v270
        %v285 = vmul.f32 %v241, %v269
        %v286 = vmul.f32 %v242, %v270
        %v291 = vlaneseq
        %v292 = vshrl.u32 %v291, 7
        %v293 = vsub.s32 0, %v292
        %v294 = vrot.slane %v271, %v293
        %v295 = vlaneseq
        %v296 = vshrl.u32 %v295, 7
        %v297 = vsub.s32 0, %v296
        %v298 = vrot.slane %v272, %v297
        %v299 = vlaneseq
        %v300 = vshrl.u32 %v299, 7
        %v301 = vsub.s32 0, %v300
        %v302 = vrot.slane %v273, %v301
        %v303 = vlaneseq
        %v304 = vshrl.u32 %v303, 7
        %v305 = vsub.s32 0, %v304
        %v306 = vrot.slane %v274, %v305
        %307 = vset.pattern.permute.xlu0 0
        %308 = vperm.xlu0 %307, %v294
        %v309 = vpop.permute.xlu0 %308
        %311 = vset.pattern.permute.xlu0 0
        %312 = vperm.xlu0 %311, %v298
        %v313 = vpop.permute.xlu0 %312
        %315 = vset.pattern.permute.xlu0 0
        %316 = vperm.xlu0 %315, %v302
        %v317 = vpop.permute.xlu0 %316
        %319 = vset.pattern.permute.xlu0 0
        %320 = vperm.xlu0 %319, %v306
        %v321 = vpop.permute.xlu0 %320
        %v323 = vmul.f32 %v279, %v309
        %v324 = vmul.f32 %v280, %v309
        %v325 = vmul.f32 %v281, %v313
        %v326 = vmul.f32 %v282, %v313
        %v327 = vmul.f32 %v283, %v317
        %v328 = vmul.f32 %v284, %v317
        %v329 = vmul.f32 %v285, %v321
        %v330 = vmul.f32 %v286, %v321
        %v335 = vlaneseq
        %v336 = vshrl.u32 %v335, 7
        %v337 = vsub.s32 0, %v336
        %v338 = vrot.slane %v275, %v337
        %v339 = vlaneseq
        %v340 = vshrl.u32 %v339, 7
        %v341 = vsub.s32 0, %v340
        %v342 = vrot.slane %v276, %v341
        %v343 = vlaneseq
        %v344 = vshrl.u32 %v343, 7
        %v345 = vsub.s32 0, %v344
        %v346 = vrot.slane %v277, %v345
        %v347 = vlaneseq
        %v348 = vshrl.u32 %v347, 7
        %v349 = vsub.s32 0, %v348
        %v350 = vrot.slane %v278, %v349
        %351 = vset.pattern.permute.xlu0 0
        %352 = vperm.xlu0 %351, %v338
        %v353 = vpop.permute.xlu0 %352
        %355 = vset.pattern.permute.xlu0 0
        %356 = vperm.xlu0 %355, %v342
        %v357 = vpop.permute.xlu0 %356
        %359 = vset.pattern.permute.xlu0 0
        %360 = vperm.xlu0 %359, %v346
        %v361 = vpop.permute.xlu0 %360
        %363 = vset.pattern.permute.xlu0 0
        %364 = vperm.xlu0 %363, %v350
        %v365 = vpop.permute.xlu0 %364
        %v367 = vadd.f32 %v323, %v353
        %v368 = vadd.f32 %v324, %v353
        %v369 = vadd.f32 %v325, %v357
        %v370 = vadd.f32 %v326, %v357
        %v371 = vadd.f32 %v327, %v361
        %v372 = vadd.f32 %v328, %v361
        %v373 = vadd.f32 %v329, %v365
        %v374 = vadd.f32 %v330, %v365
        %375 = vst.msk [vmem:[%s206] sm:$0xff] %vm217, %v367
        %376 = vst.msk [vmem:[%s206 + $0x8] sm:$0xff] %vm217, %v368
        %377 = vst.msk [vmem:[%s206 + $0x10] sm:$0xff] %vm217, %v369
        %378 = vst.msk [vmem:[%s206 + $0x18] sm:$0xff] %vm217, %v370
        %379 = vst.msk [vmem:[%s206 + $0x20] sm:$0xff] %vm217, %v371
        %380 = vst.msk [vmem:[%s206 + $0x28] sm:$0xff] %vm217, %v372
        %381 = vst.msk [vmem:[%s206 + $0x30] sm:$0xff] %vm217, %v373
        %382 = vst.msk [vmem:[%s206 + $0x38] sm:$0xff] %vm217, %v374
        %s383 = sand.u32 %s112, 1
        %s384 = scalar_lea.sflag [#allocation4], %s383
        %s385 = sand.u32 %s112, 1
        %s386 = smul.addr %s385, 64
        %s387 = scalar_lea.vmem [#allocation5], %s386
        // Predicated region
        $region37: #{tpu_custom_call.1} parent=31 // pred_check
          %p388 = pneg %p122
        $region38: #{tpu_custom_call.1} parent=31 // pred_check_branch
          %390 = sbr.rel (%p388) target = $region40
        $region39: #{tpu_custom_call.1} parent=31 // pred_region
          %s391 = smul.u32 2, %s25
          %s393 = ssub.s32 1024, 1024
          %394 = vsyncadd %s384, %s393
          %s395 = smul.addr %s24, 8
          %s396 = sadd.s32 %s391, %s395
          %s397 = smul.addr %s396, 128
          %s398 = scalar_lea.hbm %s3, %s397
          %s399 = sshll.u32 %s387, 4
          %s400 = int_to_ptr.vmem [resolvable:$true] %s399
          %405 = dma.vmem_to_hbm [thread:$0]  %s400, 1024, %s398, %s384, 128, 128, 8
        $region40: #{tpu_custom_call.1} parent=31 // pred_fallthru
          _
      $region32: #{tpu_custom_call.1} parent=5 // pred_fallthru
        _
      %p406 = scmp.le.s32.totalorder 2, %s15
      // Predicated region
      $region41: #{tpu_custom_call.1} parent=5 // pred_check
        %p407 = pneg %p406
      $region42: #{tpu_custom_call.1} parent=5 // pred_check_branch
        %409 = sbr.rel (%p407) target = $region44
      $region43: #{tpu_custom_call.1} parent=5 // pred_region
        %s410 = ssub.s32 %s15, 2
        // Predicated region
        $region45: #{tpu_custom_call.1} parent=43 // pred_check
          %p411 = pneg %p128
        $region46: #{tpu_custom_call.1} parent=43 // pred_check_branch
          %413 = sbr.rel (%p411) target = $region48
        $region47: #{tpu_custom_call.1} parent=43 // pred_region
          %s414 = sand.u32 %s113, 1
          %s415 = scalar_lea.sflag [#allocation4], %s414
          %s416 = sand.u32 %s113, 1
          %s417 = smul.addr %s416, 64
          %s418 = scalar_lea.vmem [#allocation5], %s417
          %419 = dma.done %s415, 1024
        $region48: #{tpu_custom_call.1} parent=43 // pred_fallthru
          _
      $region44: #{tpu_custom_call.1} parent=5 // pred_fallthru
        _
    $region6: #{tpu_custom_call.1} parent=1 // loop_footer
      %s19 = sadd.s32 1, %s15
    $region7: #{tpu_custom_call.1} parent=1 // loop_footer_branch
      %14 = sbr.rel target = $region3
    $region8: #{tpu_custom_call.1} parent=1 // loop_exit
      _
    %420 = vsyncpa [#allocation3], 1
    %s421 = scalar_lea.sflag [#allocation3], 1
    %422 = vsyncpa %s421, 1
    %423 = vsyncpa [#allocation4], 1
    %s424 = scalar_lea.sflag [#allocation4], 1
    %425 = vsyncpa %s424, 1

</llo_original>
